<compile_context>
chip_gen: v7x
topology: tpu7x:2x2x1
jax: 0.10.0
libtpu: 0.0.40
codegen_flags: <defaults>
</compile_context>

<pallas_src>
import functools

import jax
import jax.numpy as jnp
from jax import lax
from jax.experimental import pallas as pl
from jax.experimental.pallas import tpu as pltpu

# Deterministic hyper-parameters (AmSoftmax defaults + AngularProto defaults).
MARGIN = 0.3       # AmSoftmax margin m
SCALE = 15.0       # AmSoftmax scale s
W_AP = 10.0        # AngularProto init_w (learnable in torch; constant here)
B_AP = -5.0        # AngularProto init_b
# NOTE: the reference angleproto does `torch.clamp(self.w, 1e-6)` but discards
# the result (a no-op), so no clamp is applied here either.

AMS_EPS_SQ = 1e-24   # (1e-12)^2 : matches torch .clamp(min=1e-12) on the norm
AP_EPS_SQ = 1e-16    # (1e-8)^2  : matches F.cosine_similarity eps=1e-8


def _amsoftmax_proto_kernel(x_blk_ref, x_full_ref, label_ref, w_ref, out_ref):
    TN, V, D = x_blk_ref.shape        # V == 2 ; this tile's speakers
    N = x_full_ref.shape[0]           # all speakers (anchors)
    C = w_ref.shape[1]
    M = TN * V                        # AmSoftmax rows handled by this tile
    tile = pl.program_id(0)

    xv = x_blk_ref[...].astype(jnp.float32)        # (TN, 2, D)
    x2 = xv.reshape(M, D)                          # tile of x.reshape(-1, D)
    lab = label_ref[...]                           # (M, 1) int32 (repeat_interleaved)

    # ---------------- AmSoftmax (this tile's 2*TN rows) ----------------
    inv_x = lax.rsqrt(jnp.maximum(jnp.sum(x2 * x2, axis=1, keepdims=True), AMS_EPS_SQ))
    xn = (x2 * inv_x).astype(jnp.bfloat16)

    W = w_ref[...].astype(jnp.float32)
    inv_w = lax.rsqrt(jnp.maximum(jnp.sum(W * W, axis=0, keepdims=True), AMS_EPS_SQ))
    wn = (W * inv_w).astype(jnp.bfloat16)

    costh = jnp.dot(xn, wn, preferred_element_type=jnp.float32)      # (M, C) f32

    cls_iota = lax.broadcasted_iota(jnp.int32, (M, C), 1)
    mask = cls_iota == lab                                            # bool one-hot
    scaled = SCALE * costh
    logits = jnp.where(mask, scaled - SCALE * MARGIN, scaled)         # costh_m_s

    row_max = jnp.max(logits, axis=1, keepdims=True)
    lse = row_max + jnp.log(jnp.sum(jnp.exp(logits - row_max), axis=1, keepdims=True))
    tgt = jnp.sum(jnp.where(mask, logits, 0.0), axis=1, keepdims=True)
    loss_s_part = jnp.sum(lse - tgt)                                  # partial CE sum

    # top-1 accuracy count (first-max tie-break like torch.topk)
    is_max = logits == row_max
    pred = jnp.min(jnp.where(is_max, cls_iota, C), axis=1, keepdims=True)
    correct_part = jnp.sum((pred == lab).astype(jnp.float32))

    # ---------------- AngularProto (TN positives vs all N anchors) ----------------
    xf = x_full_ref[...].astype(jnp.float32)
    anc = xf[:, 1, :]                              # (N, D)  mean over views[1:]
    pos = xv[:, 0, :]                              # (TN, D)

    inv_p = lax.rsqrt(jnp.maximum(jnp.sum(pos * pos, axis=1, keepdims=True), AP_EPS_SQ))
    inv_a = lax.rsqrt(jnp.maximum(jnp.sum(anc * anc, axis=1, keepdims=True), AP_EPS_SQ))
    pos_n = (pos * inv_p).astype(jnp.bfloat16)     # normalization folded into operands
    anc_n = (anc * inv_a).astype(jnp.bfloat16)

    cos_sim = lax.dot_general(pos_n, anc_n, (((1,), (1,)), ((), ())),
                              preferred_element_type=jnp.float32)     # (TN, N)
    ap_logits = cos_sim * W_AP + B_AP

    rmax = jnp.max(ap_logits, axis=1, keepdims=True)
    lse_p = rmax + jnp.log(jnp.sum(jnp.exp(ap_logits - rmax), axis=1, keepdims=True))
    row_iota = lax.broadcasted_iota(jnp.int32, (TN, N), 0)
    col_iota = lax.broadcasted_iota(jnp.int32, (TN, N), 1)
    diag_mask = col_iota == (row_iota + tile * TN)                    # labels = arange(N)
    diag = jnp.sum(jnp.where(diag_mask, ap_logits, 0.0), axis=1, keepdims=True)
    loss_p_part = jnp.sum(lse_p - diag)                               # partial CE sum

    # -------- pack the 3 partial scalars into a lane-dense (8,128) block --------
    r = lax.broadcasted_iota(jnp.int32, (8, 128), 0)
    c = lax.broadcasted_iota(jnp.int32, (8, 128), 1)
    first = r == 0
    out_ref[...] = jnp.where(first & (c == 0), loss_s_part,
                   jnp.where(first & (c == 1), correct_part,
                   jnp.where(first & (c == 2), loss_p_part, 0.0)))


@functools.partial(jax.jit, static_argnames=("tile_n",))
def amsoftmax_proto(x, label, W, *, tile_n=8):
    """x: (N, 2, D) f32, label: (N,) int32, W: (D, C) f32 -> (loss, prec1) scalars."""
    N, V, D = x.shape
    assert V == 2
    C = W.shape[1]
    # tile constraints: divides N; 2*tile_n is sublane (8) aligned for the label block
    assert N % tile_n == 0 and (2 * tile_n) % 8 == 0
    num_tiles = N // tile_n

    label2 = jnp.repeat(label.astype(jnp.int32), 2).reshape(2 * N, 1)  # repeat_interleave(2)
    x = x.astype(jnp.float32)
    W = W.astype(jnp.float32)

    # advisory cost estimate for XLA scheduling of surrounding ops
    flops = 2 * (2 * N) * D * C + 2 * N * D * N
    transcendentals = (2 * N) * C + N * N + 3 * N + C
    bytes_accessed = 4 * (2 * x.size + W.size + label2.size + num_tiles * 8 * 128)

    parts = pl.pallas_call(
        _amsoftmax_proto_kernel,
        grid=(num_tiles,),
        in_specs=[
            pl.BlockSpec((tile_n, 2, D), lambda i: (i, 0, 0)),   # this tile's speakers
            pl.BlockSpec((N, 2, D), lambda i: (0, 0, 0)),        # full x (anchors), resident
            pl.BlockSpec((2 * tile_n, 1), lambda i: (i, 0)),     # this tile's labels
            pl.BlockSpec((D, C), lambda i: (0, 0)),              # AmSoftmax weight, resident
        ],
        out_specs=pl.BlockSpec((8, 128), lambda i: (i, 0)),      # per-tile partials
        out_shape=jax.ShapeDtypeStruct((num_tiles * 8, 128), jnp.float32),
        compiler_params=pltpu.CompilerParams(
            dimension_semantics=("parallel",),
        ),
        cost_estimate=pl.CostEstimate(
            flops=int(flops),
            transcendentals=int(transcendentals),
            bytes_accessed=int(bytes_accessed),
        ),
    )(x, x, label2, W)

    tiles = parts.reshape(num_tiles, 8, 128)
    loss_s_sum = jnp.sum(tiles[:, 0, 0])
    correct_sum = jnp.sum(tiles[:, 0, 1])
    loss_p_sum = jnp.sum(tiles[:, 0, 2])

    loss = loss_s_sum / (2 * N) + loss_p_sum / N       # mean CE (AmSoftmax) + mean CE (proto)
    prec1 = 100.0 * correct_sum / (2 * N)              # top-1 accuracy (%) over 2N rows
    return loss, prec1


if __name__ == "__main__":
    # Small shapes consistent with the module: N speakers x 2 utterances x D feats,
    # chosen lane/sublane friendly (D multiple of 128, 2*tile_n multiple of 8).
    N, D, C = 16, 128, 256
    TILE_N = 8

    key = jax.random.PRNGKey(0)
    kx, kw, kl = jax.random.split(key, 3)

    x = jax.random.normal(kx, (N, 2, D), dtype=jnp.float32)
    label = jax.random.randint(kl, (N,), 0, C, dtype=jnp.int32)

    # AmSoftmax weight: torch.randn(nOut, nClasses) + xavier_normal_(gain=1)
    xavier_std = (2.0 / (D + C)) ** 0.5
    W = xavier_std * jax.random.normal(kw, (D, C), dtype=jnp.float32)

    loss, prec1 = amsoftmax_proto(x, label, W, tile_n=TILE_N)
    jax.block_until_ready((loss, prec1))

    print("KERNEL_OK")
</pallas_src>

<mosaic_0001>
module attributes {stable_mosaic.version = 11 : i64} {
  func.func @_amsoftmax_proto_kernel(%arg0: i32, %arg1: memref<8x2x128xf32, #tpu.memory_space<vmem>>, %arg2: memref<16x2x128xf32, #tpu.memory_space<vmem>>, %arg3: memref<16x1xi32, #tpu.memory_space<vmem>>, %arg4: memref<128x256xf32, #tpu.memory_space<vmem>>, %arg5: memref<8x128xf32, #tpu.memory_space<vmem>>) attributes {dimension_semantics = [#tpu.dimension_semantics<parallel>], iteration_bounds = array<i64: 2>, scalar_prefetch = 0 : i64, scratch_operands = 0 : i64, tpu.core_type = #tpu.core_type<tc>, window_params = [{transform_indices = @transform_0, window_bounds = array<i64: 8, 2, 128>}, {pipeline_mode = #tpu.pipeline_mode<synchronous>, transform_indices = @transform_1, window_bounds = array<i64: 16, 2, 128>}, {transform_indices = @transform_2, window_bounds = array<i64: 16, 1>}, {pipeline_mode = #tpu.pipeline_mode<synchronous>, transform_indices = @transform_3, window_bounds = array<i64: 128, 256>}, {transform_indices = @transform_4, window_bounds = array<i64: 8, 128>}]} {
    %c0 = arith.constant 0 : index
    %c0_0 = arith.constant 0 : index
    %c0_1 = arith.constant 0 : index
    %0 = vector.load %arg1[%c0, %c0_0, %c0_1] : memref<8x2x128xf32, #tpu.memory_space<vmem>>, vector<8x2x128xf32>
    %1 = vector.shape_cast %0 : vector<8x2x128xf32> to vector<16x128xf32>
    %c0_2 = arith.constant 0 : index
    %c0_3 = arith.constant 0 : index
    %2 = vector.load %arg3[%c0_2, %c0_3] : memref<16x1xi32, #tpu.memory_space<vmem>>, vector<16x1xi32>
    %3 = arith.mulf %1, %1 : vector<16x128xf32>
    %cst = arith.constant dense<0.000000e+00> : vector<16xf32>
    %4 = vector.multi_reduction <add>, %3, %cst [1] : vector<16x128xf32> to vector<16xf32>
    %5 = vector.shape_cast %4 : vector<16xf32> to vector<16x1xf32>
    %cst_4 = arith.constant 1.000000e-24 : f32
    %6 = vector.broadcast %cst_4 : f32 to vector<16x1xf32>
    %7 = arith.maximumf %5, %6 : vector<16x1xf32>
    %8 = math.rsqrt %7 : vector<16x1xf32>
    %9 = vector.broadcast %8 : vector<16x1xf32> to vector<16x128xf32>
    %10 = arith.mulf %1, %9 : vector<16x128xf32>
    %11 = arith.truncf %10 : vector<16x128xf32> to vector<16x128xbf16>
    %c0_5 = arith.constant 0 : index
    %c0_6 = arith.constant 0 : index
    %12 = vector.load %arg4[%c0_5, %c0_6] : memref<128x256xf32, #tpu.memory_space<vmem>>, vector<128x256xf32>
    %13 = arith.mulf %12, %12 : vector<128x256xf32>
    %cst_7 = arith.constant dense<0.000000e+00> : vector<256xf32>
    %14 = vector.multi_reduction <add>, %13, %cst_7 [0] : vector<128x256xf32> to vector<256xf32>
    %15 = vector.shape_cast %14 : vector<256xf32> to vector<1x256xf32>
    %cst_8 = arith.constant 1.000000e-24 : f32
    %16 = vector.broadcast %cst_8 : f32 to vector<1x256xf32>
    %17 = arith.maximumf %15, %16 : vector<1x256xf32>
    %18 = math.rsqrt %17 : vector<1x256xf32>
    %19 = vector.broadcast %18 : vector<1x256xf32> to vector<128x256xf32>
    %20 = arith.mulf %12, %19 : vector<128x256xf32>
    %21 = arith.truncf %20 : vector<128x256xf32> to vector<128x256xbf16>
    %cst_9 = arith.constant dense<0.000000e+00> : vector<16x256xf32>
    %22 = tpu.matmul %11, %21, %cst_9 {dimension_numbers = #tpu.dot_dimension_numbers<[1], [0], [0], [1], [0, 0, 1, 1], [], []>} : vector<16x128xbf16>, vector<128x256xbf16>, vector<16x256xf32> -> vector<16x256xf32>
    %23 = tpu.iota {dimensions = array<i32: 1>} : vector<16x256xi32>
    %24 = vector.broadcast %2 : vector<16x1xi32> to vector<16x256xi32>
    %25 = arith.cmpi eq, %23, %24 : vector<16x256xi32>
    %cst_10 = arith.constant 1.500000e+01 : f32
    %26 = vector.broadcast %cst_10 : f32 to vector<16x256xf32>
    %27 = arith.mulf %26, %22 : vector<16x256xf32>
    %cst_11 = arith.constant 4.500000e+00 : f32
    %28 = vector.broadcast %cst_11 : f32 to vector<16x256xf32>
    %29 = arith.subf %27, %28 : vector<16x256xf32>
    %30 = arith.select %25, %29, %27 : vector<16x256xi1>, vector<16x256xf32>
    %cst_12 = arith.constant dense<0xFF800000> : vector<16xf32>
    %31 = vector.multi_reduction <maximumf>, %30, %cst_12 [1] : vector<16x256xf32> to vector<16xf32>
    %32 = vector.shape_cast %31 : vector<16xf32> to vector<16x1xf32>
    %33 = vector.broadcast %32 : vector<16x1xf32> to vector<16x256xf32>
    %34 = arith.subf %30, %33 : vector<16x256xf32>
    %35 = math.exp %34 : vector<16x256xf32>
    %cst_13 = arith.constant dense<0.000000e+00> : vector<16xf32>
    %36 = vector.multi_reduction <add>, %35, %cst_13 [1] : vector<16x256xf32> to vector<16xf32>
    %37 = vector.shape_cast %36 : vector<16xf32> to vector<16x1xf32>
    %38 = math.log %37 : vector<16x1xf32>
    %39 = arith.addf %32, %38 : vector<16x1xf32>
    %cst_14 = arith.constant 0.000000e+00 : f32
    %40 = vector.broadcast %cst_14 : f32 to vector<16x256xf32>
    %41 = arith.select %25, %30, %40 : vector<16x256xi1>, vector<16x256xf32>
    %cst_15 = arith.constant dense<0.000000e+00> : vector<16xf32>
    %42 = vector.multi_reduction <add>, %41, %cst_15 [1] : vector<16x256xf32> to vector<16xf32>
    %43 = vector.shape_cast %42 : vector<16xf32> to vector<16x1xf32>
    %44 = arith.subf %39, %43 : vector<16x1xf32>
    %45 = vector.shape_cast %44 : vector<16x1xf32> to vector<1x16x1xf32>
    %cst_16 = arith.constant dense<0.000000e+00> : vector<1xf32>
    %46 = vector.multi_reduction <add>, %45, %cst_16 [1, 2] : vector<1x16x1xf32> to vector<1xf32>
    %47 = vector.shape_cast %46 : vector<1xf32> to vector<1x1x1xf32>
    %48 = vector.extract %47[0, 0, 0] : f32 from vector<1x1x1xf32>
    %49 = vector.broadcast %32 : vector<16x1xf32> to vector<16x256xf32>
    %50 = arith.cmpf oeq, %30, %49 : vector<16x256xf32>
    %c256_i32 = arith.constant 256 : i32
    %51 = vector.broadcast %c256_i32 : i32 to vector<16x256xi32>
    %52 = arith.select %50, %23, %51 : vector<16x256xi1>, vector<16x256xi32>
    %cst_17 = arith.constant dense<2147483647> : vector<16xi32>
    %53 = vector.multi_reduction <minsi>, %52, %cst_17 [1] : vector<16x256xi32> to vector<16xi32>
    %54 = vector.shape_cast %53 : vector<16xi32> to vector<16x1xi32>
    %55 = arith.cmpi eq, %54, %2 : vector<16x1xi32>
    %56 = arith.extui %55 : vector<16x1xi1> to vector<16x1xi32>
    %57 = arith.sitofp %56 : vector<16x1xi32> to vector<16x1xf32>
    %58 = vector.shape_cast %57 : vector<16x1xf32> to vector<1x16x1xf32>
    %cst_18 = arith.constant dense<0.000000e+00> : vector<1xf32>
    %59 = vector.multi_reduction <add>, %58, %cst_18 [1, 2] : vector<1x16x1xf32> to vector<1xf32>
    %60 = vector.shape_cast %59 : vector<1xf32> to vector<1x1x1xf32>
    %61 = vector.extract %60[0, 0, 0] : f32 from vector<1x1x1xf32>
    %c0_19 = arith.constant 0 : index
    %c0_20 = arith.constant 0 : index
    %c0_21 = arith.constant 0 : index
    %62 = vector.load %arg2[%c0_19, %c0_20, %c0_21] : memref<16x2x128xf32, #tpu.memory_space<vmem>>, vector<16x2x128xf32>
    %63 = vector.extract_strided_slice %62 {offsets = [0, 1, 0], sizes = [16, 1, 128], strides = [1, 1, 1]} : vector<16x2x128xf32> to vector<16x1x128xf32>
    %64 = vector.shape_cast %63 : vector<16x1x128xf32> to vector<16x128xf32>
    %65 = vector.extract_strided_slice %0 {offsets = [0, 0, 0], sizes = [8, 1, 128], strides = [1, 1, 1]} : vector<8x2x128xf32> to vector<8x1x128xf32>
    %66 = vector.shape_cast %65 : vector<8x1x128xf32> to vector<8x128xf32>
    %67 = arith.mulf %66, %66 : vector<8x128xf32>
    %cst_22 = arith.constant dense<0.000000e+00> : vector<8xf32>
    %68 = vector.multi_reduction <add>, %67, %cst_22 [1] : vector<8x128xf32> to vector<8xf32>
    %69 = vector.shape_cast %68 : vector<8xf32> to vector<8x1xf32>
    %cst_23 = arith.constant 1.000000e-16 : f32
    %70 = vector.broadcast %cst_23 : f32 to vector<8x1xf32>
    %71 = arith.maximumf %69, %70 : vector<8x1xf32>
    %72 = math.rsqrt %71 : vector<8x1xf32>
    %73 = arith.mulf %64, %64 : vector<16x128xf32>
    %cst_24 = arith.constant dense<0.000000e+00> : vector<16xf32>
    %74 = vector.multi_reduction <add>, %73, %cst_24 [1] : vector<16x128xf32> to vector<16xf32>
    %75 = vector.shape_cast %74 : vector<16xf32> to vector<16x1xf32>
    %cst_25 = arith.constant 1.000000e-16 : f32
    %76 = vector.broadcast %cst_25 : f32 to vector<16x1xf32>
    %77 = arith.maximumf %75, %76 : vector<16x1xf32>
    %78 = math.rsqrt %77 : vector<16x1xf32>
    %79 = vector.broadcast %72 : vector<8x1xf32> to vector<8x128xf32>
    %80 = arith.mulf %66, %79 : vector<8x128xf32>
    %81 = arith.truncf %80 : vector<8x128xf32> to vector<8x128xbf16>
    %82 = vector.broadcast %78 : vector<16x1xf32> to vector<16x128xf32>
    %83 = arith.mulf %64, %82 : vector<16x128xf32>
    %84 = arith.truncf %83 : vector<16x128xf32> to vector<16x128xbf16>
    %cst_26 = arith.constant dense<0.000000e+00> : vector<8x16xf32>
    %85 = tpu.matmul %81, %84, %cst_26 {dimension_numbers = #tpu.dot_dimension_numbers<[1], [1], [0], [0], [0, 0, 1, 0], [], []>} : vector<8x128xbf16>, vector<16x128xbf16>, vector<8x16xf32> -> vector<8x16xf32>
    %cst_27 = arith.constant 1.000000e+01 : f32
    %86 = vector.broadcast %cst_27 : f32 to vector<8x16xf32>
    %87 = arith.mulf %85, %86 : vector<8x16xf32>
    %cst_28 = arith.constant -5.000000e+00 : f32
    %88 = vector.broadcast %cst_28 : f32 to vector<8x16xf32>
    %89 = arith.addf %87, %88 : vector<8x16xf32>
    %cst_29 = arith.constant dense<0xFF800000> : vector<8xf32>
    %90 = vector.multi_reduction <maximumf>, %89, %cst_29 [1] : vector<8x16xf32> to vector<8xf32>
    %91 = vector.shape_cast %90 : vector<8xf32> to vector<8x1xf32>
    %92 = vector.broadcast %91 : vector<8x1xf32> to vector<8x16xf32>
    %93 = arith.subf %89, %92 : vector<8x16xf32>
    %94 = math.exp %93 : vector<8x16xf32>
    %cst_30 = arith.constant dense<0.000000e+00> : vector<8xf32>
    %95 = vector.multi_reduction <add>, %94, %cst_30 [1] : vector<8x16xf32> to vector<8xf32>
    %96 = vector.shape_cast %95 : vector<8xf32> to vector<8x1xf32>
    %97 = math.log %96 : vector<8x1xf32>
    %98 = arith.addf %91, %97 : vector<8x1xf32>
    %99 = tpu.iota {dimensions = array<i32: 0>} : vector<8x16xi32>
    %100 = tpu.iota {dimensions = array<i32: 1>} : vector<8x16xi32>
    %c8_i32 = arith.constant 8 : i32
    %101 = arith.muli %arg0, %c8_i32 : i32
    %102 = vector.broadcast %101 : i32 to vector<8x16xi32>
    %103 = arith.addi %99, %102 : vector<8x16xi32>
    %104 = arith.cmpi eq, %100, %103 : vector<8x16xi32>
    %cst_31 = arith.constant 0.000000e+00 : f32
    %105 = vector.broadcast %cst_31 : f32 to vector<8x16xf32>
    %106 = arith.select %104, %89, %105 : vector<8x16xi1>, vector<8x16xf32>
    %cst_32 = arith.constant dense<0.000000e+00> : vector<8xf32>
    %107 = vector.multi_reduction <add>, %106, %cst_32 [1] : vector<8x16xf32> to vector<8xf32>
    %108 = vector.shape_cast %107 : vector<8xf32> to vector<8x1xf32>
    %109 = arith.subf %98, %108 : vector<8x1xf32>
    %110 = vector.shape_cast %109 : vector<8x1xf32> to vector<1x8x1xf32>
    %cst_33 = arith.constant dense<0.000000e+00> : vector<1xf32>
    %111 = vector.multi_reduction <add>, %110, %cst_33 [1, 2] : vector<1x8x1xf32> to vector<1xf32>
    %112 = vector.shape_cast %111 : vector<1xf32> to vector<1x1x1xf32>
    %113 = vector.extract %112[0, 0, 0] : f32 from vector<1x1x1xf32>
    %114 = tpu.iota {dimensions = array<i32: 0>} : vector<8x128xi32>
    %115 = tpu.iota {dimensions = array<i32: 1>} : vector<8x128xi32>
    %c0_i32 = arith.constant 0 : i32
    %116 = vector.broadcast %c0_i32 : i32 to vector<8x128xi32>
    %117 = arith.cmpi eq, %114, %116 : vector<8x128xi32>
    %c0_i32_34 = arith.constant 0 : i32
    %118 = vector.broadcast %c0_i32_34 : i32 to vector<8x128xi32>
    %119 = arith.cmpi eq, %115, %118 : vector<8x128xi32>
    %120 = arith.andi %117, %119 : vector<8x128xi1>
    %c1_i32 = arith.constant 1 : i32
    %121 = vector.broadcast %c1_i32 : i32 to vector<8x128xi32>
    %122 = arith.cmpi eq, %115, %121 : vector<8x128xi32>
    %123 = arith.andi %117, %122 : vector<8x128xi1>
    %c2_i32 = arith.constant 2 : i32
    %124 = vector.broadcast %c2_i32 : i32 to vector<8x128xi32>
    %125 = arith.cmpi eq, %115, %124 : vector<8x128xi32>
    %126 = arith.andi %117, %125 : vector<8x128xi1>
    %cst_35 = arith.constant 0.000000e+00 : f32
    %127 = vector.broadcast %113 : f32 to vector<8x128xf32>
    %128 = vector.broadcast %cst_35 : f32 to vector<8x128xf32>
    %129 = arith.select %126, %127, %128 : vector<8x128xi1>, vector<8x128xf32>
    %130 = vector.broadcast %61 : f32 to vector<8x128xf32>
    %131 = arith.select %123, %130, %129 : vector<8x128xi1>, vector<8x128xf32>
    %132 = vector.broadcast %48 : f32 to vector<8x128xf32>
    %133 = arith.select %120, %132, %131 : vector<8x128xi1>, vector<8x128xf32>
    %c0_36 = arith.constant 0 : index
    %c0_37 = arith.constant 0 : index
    %134 = vector.load %arg5[%c0_36, %c0_37] : memref<8x128xf32, #tpu.memory_space<vmem>>, vector<8x128xf32>
    tpu.vector_store %arg5[%c0_36, %c0_37], %133 {strides = array<i32>} : memref<8x128xf32, #tpu.memory_space<vmem>>, vector<8x128xf32>,
    return
  }
  func.func @transform_0(%arg0: i32) -> (i32, i32, i32) {
    %c0_i32 = arith.constant 0 : i32
    %c0_i32_0 = arith.constant 0 : i32
    %c0_i32_1 = arith.constant 0 : i32
    return %arg0, %c0_i32, %c0_i32_0 : i32, i32, i32
  }
  func.func @transform_1(%arg0: i32) -> (i32, i32, i32) {
    %c0_i32 = arith.constant 0 : i32
    %c0_i32_0 = arith.constant 0 : i32
    %c0_i32_1 = arith.constant 0 : i32
    %c0_i32_2 = arith.constant 0 : i32
    return %c0_i32, %c0_i32_0, %c0_i32_1 : i32, i32, i32
  }
  func.func @transform_2(%arg0: i32) -> (i32, i32) {
    %c0_i32 = arith.constant 0 : i32
    %c0_i32_0 = arith.constant 0 : i32
    return %arg0, %c0_i32 : i32, i32
  }
  func.func @transform_3(%arg0: i32) -> (i32, i32) {
    %c0_i32 = arith.constant 0 : i32
    %c0_i32_0 = arith.constant 0 : i32
    %c0_i32_1 = arith.constant 0 : i32
    return %c0_i32, %c0_i32_0 : i32, i32
  }
  func.func @transform_4(%arg0: i32) -> (i32, i32) {
    %c0_i32 = arith.constant 0 : i32
    %c0_i32_0 = arith.constant 0 : i32
    return %arg0, %c0_i32 : i32, i32
  }
}

</mosaic_0001>

<llo_original>
// kernel: amsoftmax_proto.1
$region0: #{amsoftmax_proto.1}
  #allocation0 [shape = 'u32[]', space=smem, size = 0x4, offset = 0x4, fixed_abs, tag = 'smem constant byte address 0x4 - core index']
  #allocation1 [shape = 'u32[144,128]{1,0:T(1,128)}', space=vmem, size = 0x12000, scoped, tag = 'internal scratch']
  %s0 = inlined_call_operand.vmem [shape: f32[16,2,128], index: 0, kind: input, shape index: {}, may-alias: {0,1}]
  %s1 = inlined_call_operand.vmem [shape: f32[16,2,128], index: 1, kind: input, shape index: {}, may-alias: {0,1}]
  %s2 = inlined_call_operand.vmem [shape: s32[32,1], index: 2, kind: input, shape index: {}]
  %s3 = inlined_call_operand.hbm [shape: f32[128,256], index: 3, kind: input, shape index: {}]
  %s4 = inlined_call_operand.vmem [shape: f32[16,128], index: 4, kind: output, shape index: {}]
  %s5 = sld [smem:[#allocation0]]
  $region53: #{amsoftmax_proto.1} parent=0
    _
  %s7 = ssub.s32 1, %s5
  %s8 = scalar_select 0, %s7, %s5
  $region1: #{amsoftmax_proto.1} parent=0
    #allocation2 [shape = 'u8[131072]{0}', space=vmem, size = 0x20000, scoped, tag = 'input window, operand 3, single buffered']
    #allocation3 [shape = 's32[2]{0}', space=sflag, size = 0x8, scoped, tag = 'scoped memory for amsoftmax_proto.1']
    %9 = vsyncpa [#allocation3], 0
    loop: start=0, step=1, limit=4
    $region2: #{amsoftmax_proto.1} parent=1 // loop_pre_header
      _
    $region3: #{amsoftmax_proto.1} parent=1 // loop_header
      %s11 = sphi 0, %s15
      %p12 = scmp.ge.s32.totalorder %s11, 4
      %s21 = sphi 0, %s23
      %s24 = sphi 0, %s21
      %s25 = sphi 0, %s24
      %s41 = sphi 0, %s25
      %s45 = sphi 0, %s45
      %s47 = sphi 0, %s45
      %s48 = sphi 0, %s47
      %s62 = sphi 0, %s48
      %s68 = sphi 0, %s70
      %s71 = sphi 0, %s68
      %s72 = sphi 0, %s71
      %s88 = sphi 0, %s72
      %s92 = sphi 0, %s92
      %s94 = sphi 0, %s92
      %s95 = sphi 0, %s94
      %s109 = sphi 0, %s95
      %s115 = sphi 0, %s117
      %s118 = sphi 0, %s115
      %s119 = sphi 0, %s118
      %s135 = sphi 0, %s119
    $region4: #{amsoftmax_proto.1} parent=1 // loop_header_branch
      %14 = sbr.rel (%p12) target = $region8
    $region5: #{amsoftmax_proto.1} parent=1 // loop_body
      %s16 = ssub.s32 %s11, 1
      %s17 = ssub.s32 %s11, 2
      %s18 = sadd.s32 %s11, 1
      %s19 = ssub.s32 %s11, %s18
      %p20 = scmp.eq.s32.totalorder %s19, 0
      %s22 = sadd.s32 %s21, 1
      %s23 = scalar_select %p20, %s21, %s22
      %p26 = pneg %p20
      %p27 = scmp.eq.s32.totalorder %s11, 1
      %p28 = por %p26, %p27
      %p29 = scmp.ne.s32.totalorder %s21, %s24
      %p30 = scmp.eq.s32.totalorder %s11, 0
      %p31 = por %p29, %p30
      %p32 = scmp.ne.s32.totalorder %s21, %s24
      %p33 = scmp.eq.s32.totalorder %s16, 1
      %p34 = por %p32, %p33
      %p35 = scmp.ne.s32.totalorder %s24, %s25
      %p36 = scmp.eq.s32.totalorder %s16, 0
      %p37 = por %p35, %p36
      %p38 = scmp.ne.s32.totalorder %s24, %s25
      %p39 = scmp.eq.s32.totalorder %s17, 1
      %p40 = por %p38, %p39
      %p42 = scmp.ne.s32.totalorder %s25, %s41
      %p43 = scmp.eq.s32.totalorder %s17, 0
      %p44 = por %p42, %p43
      %s46 = sadd.s32 %s45, 1
      %p49 = scmp.eq.s32.totalorder %s11, 1
      %p50 = scmp.ne.s32.totalorder %s45, %s47
      %p51 = scmp.eq.s32.totalorder %s11, 0
      %p52 = por %p50, %p51
      %p53 = scmp.ne.s32.totalorder %s45, %s47
      %p54 = scmp.eq.s32.totalorder %s16, 1
      %p55 = por %p53, %p54
      %p56 = scmp.ne.s32.totalorder %s47, %s48
      %p57 = scmp.eq.s32.totalorder %s16, 0
      %p58 = por %p56, %p57
      %p59 = scmp.ne.s32.totalorder %s47, %s48
      %p60 = scmp.eq.s32.totalorder %s17, 1
      %p61 = por %p59, %p60
      %p63 = scmp.ne.s32.totalorder %s48, %s62
      %p64 = scmp.eq.s32.totalorder %s17, 0
      %p65 = por %p63, %p64
      %s66 = ssub.s32 %s11, %s18
      %p67 = scmp.eq.s32.totalorder %s66, 0
      %s69 = sadd.s32 %s68, 1
      %s70 = scalar_select %p67, %s68, %s69
      %p73 = pneg %p67
      %p74 = scmp.eq.s32.totalorder %s11, 1
      %p75 = por %p73, %p74
      %p76 = scmp.ne.s32.totalorder %s68, %s71
      %p77 = scmp.eq.s32.totalorder %s11, 0
      %p78 = por %p76, %p77
      %p79 = scmp.ne.s32.totalorder %s68, %s71
      %p80 = scmp.eq.s32.totalorder %s16, 1
      %p81 = por %p79, %p80
      %p82 = scmp.ne.s32.totalorder %s71, %s72
      %p83 = scmp.eq.s32.totalorder %s16, 0
      %p84 = por %p82, %p83
      %p85 = scmp.ne.s32.totalorder %s71, %s72
      %p86 = scmp.eq.s32.totalorder %s17, 1
      %p87 = por %p85, %p86
      %p89 = scmp.ne.s32.totalorder %s72, %s88
      %p90 = scmp.eq.s32.totalorder %s17, 0
      %p91 = por %p89, %p90
      %s93 = sadd.s32 %s92, 1
      %p96 = scmp.eq.s32.totalorder %s11, 1
      %p97 = scmp.ne.s32.totalorder %s92, %s94
      %p98 = scmp.eq.s32.totalorder %s11, 0
      %p99 = por %p97, %p98
      %p100 = scmp.ne.s32.totalorder %s92, %s94
      %p101 = scmp.eq.s32.totalorder %s16, 1
      %p102 = por %p100, %p101
      %p103 = scmp.ne.s32.totalorder %s94, %s95
      %p104 = scmp.eq.s32.totalorder %s16, 0
      %p105 = por %p103, %p104
      %p106 = scmp.ne.s32.totalorder %s94, %s95
      %p107 = scmp.eq.s32.totalorder %s17, 1
      %p108 = por %p106, %p107
      %p110 = scmp.ne.s32.totalorder %s95, %s109
      %p111 = scmp.eq.s32.totalorder %s17, 0
      %p112 = por %p110, %p111
      %s113 = ssub.s32 %s11, %s18
      %p114 = scmp.eq.s32.totalorder %s113, 0
      %s116 = sadd.s32 %s115, 1
      %s117 = scalar_select %p114, %s115, %s116
      %p120 = pneg %p114
      %p121 = scmp.eq.s32.totalorder %s11, 1
      %p122 = por %p120, %p121
      %p123 = scmp.ne.s32.totalorder %s115, %s118
      %p124 = scmp.eq.s32.totalorder %s11, 0
      %p125 = por %p123, %p124
      %p126 = scmp.ne.s32.totalorder %s115, %s118
      %p127 = scmp.eq.s32.totalorder %s16, 1
      %p128 = por %p126, %p127
      %p129 = scmp.ne.s32.totalorder %s118, %s119
      %p130 = scmp.eq.s32.totalorder %s16, 0
      %p131 = por %p129, %p130
      %p132 = scmp.ne.s32.totalorder %s118, %s119
      %p133 = scmp.eq.s32.totalorder %s17, 1
      %p134 = por %p132, %p133
      %p136 = scmp.ne.s32.totalorder %s119, %s135
      %p137 = scmp.eq.s32.totalorder %s17, 0
      %p138 = por %p136, %p137
      %p139 = scmp.le.s32.totalorder 1, %s11
      %p140 = scmp.lt.s32.totalorder %s11, 3
      %p141 = pnand %p139, %p140
      %p142 = pneg %p141
      // Predicated region
      $region9: #{amsoftmax_proto.1} parent=5 // pred_check
        _
      $region10: #{amsoftmax_proto.1} parent=5 // pred_check_branch
        %144 = sbr.rel (%p141) target = $region12
      $region11: #{amsoftmax_proto.1} parent=5 // pred_region
        %s145 = ssub.s32 %s11, 1
        // Predicated region
        $region13: #{amsoftmax_proto.1} parent=11 // pred_check
          %p146 = pneg %p58
        $region14: #{amsoftmax_proto.1} parent=11 // pred_check_branch
          %148 = sbr.rel (%p146) target = $region16
        $region15: #{amsoftmax_proto.1} parent=11 // pred_region
          _
        $region16: #{amsoftmax_proto.1} parent=11 // pred_fallthru
          _
        // Predicated region
        $region17: #{amsoftmax_proto.1} parent=11 // pred_check
          %p149 = pneg %p105
        $region18: #{amsoftmax_proto.1} parent=11 // pred_check_branch
          %151 = sbr.rel (%p149) target = $region20
        $region19: #{amsoftmax_proto.1} parent=11 // pred_region
          %s153 = ssub.s32 4096, 4096
          %154 = vsyncadd [#allocation3], %s153
          %s155 = sshll.u32 [#allocation2], 4
          %s156 = int_to_ptr.vmem [resolvable:$true] %s155
          %161 = dma.hbm_to_vmem [thread:$0]  %s3, 4096, %s156, [#allocation3], 256, 256, 16
        $region20: #{amsoftmax_proto.1} parent=11 // pred_fallthru
          _
      $region12: #{amsoftmax_proto.1} parent=5 // pred_fallthru
        _
      %p162 = scmp.lt.s32.totalorder %s11, 2
      // Predicated region
      $region21: #{amsoftmax_proto.1} parent=5 // pred_check
        %p163 = pneg %p162
      $region22: #{amsoftmax_proto.1} parent=5 // pred_check_branch
        %165 = sbr.rel (%p163) target = $region24
      $region23: #{amsoftmax_proto.1} parent=5 // pred_region
        // Predicated region
        $region25: #{amsoftmax_proto.1} parent=23 // pred_check
          %p166 = pneg %p31
        $region26: #{amsoftmax_proto.1} parent=23 // pred_check_branch
          %168 = sbr.rel (%p166) target = $region28
        $region27: #{amsoftmax_proto.1} parent=23 // pred_region
          %s169 = smul.u32 8, %s11
          %p170 = scmp.lt.s32.totalorder %s169, 15
          %s171 = scalar_select %p170, %s169, 15
          %s172 = smul.addr %s171, 2
          %s173 = scalar_lea.vmem %s0, %s172
          %s174 = smul.u32 8, %s11
        $region28: #{amsoftmax_proto.1} parent=23 // pred_fallthru
          _
        // Predicated region
        $region29: #{amsoftmax_proto.1} parent=23 // pred_check
          %p175 = pneg %p78
        $region30: #{amsoftmax_proto.1} parent=23 // pred_check_branch
          %177 = sbr.rel (%p175) target = $region32
        $region31: #{amsoftmax_proto.1} parent=23 // pred_region
          %s178 = smul.u32 2, %s11
          %p179 = scmp.lt.s32.totalorder %s178, 3
          %s180 = scalar_select %p179, %s178, 3
          %s181 = smul.addr %s180, 8
          %s182 = scalar_lea.vmem %s2, %s181
          %s183 = smul.u32 2, %s11
        $region32: #{amsoftmax_proto.1} parent=23 // pred_fallthru
          _
      $region24: #{amsoftmax_proto.1} parent=5 // pred_fallthru
        _
      %p184 = scmp.le.s32.totalorder 1, %s11
      %p185 = scmp.lt.s32.totalorder %s11, 3
      %p186 = pnand %p184, %p185
      %p187 = pneg %p186
      // Predicated region
      $region33: #{amsoftmax_proto.1} parent=5 // pred_check
        _
      $region34: #{amsoftmax_proto.1} parent=5 // pred_check_branch
        %189 = sbr.rel (%p186) target = $region36
      $region35: #{amsoftmax_proto.1} parent=5 // pred_region
        %s190 = ssub.s32 %s11, 1
        // Predicated region
        $region37: #{amsoftmax_proto.1} parent=35 // pred_check
          %p191 = pneg %p105
        $region38: #{amsoftmax_proto.1} parent=35 // pred_check_branch
          %193 = sbr.rel (%p191) target = $region40
        $region39: #{amsoftmax_proto.1} parent=35 // pred_region
          %194 = dma.done [#allocation3], 4096
        $region40: #{amsoftmax_proto.1} parent=35 // pred_fallthru
          _
        %s195 = smul.u32 8, %s16
        %p196 = scmp.lt.s32.totalorder %s195, 15
        %s197 = scalar_select %p196, %s195, 15
        %s198 = smul.addr %s197, 2
        %s199 = scalar_lea.vmem %s0, %s198
        %p200 = pneg %p37
        %p201 = pneg %p34
        %p202 = pneg %p58
        %p203 = pneg %p55
        %s204 = smul.u32 2, %s16
        %p205 = scmp.lt.s32.totalorder %s204, 3
        %s206 = scalar_select %p205, %s204, 3
        %s207 = smul.addr %s206, 8
        %s208 = scalar_lea.vmem %s2, %s207
        %p209 = pneg %p84
        %p210 = pneg %p81
        %p211 = pneg %p105
        %p212 = pneg %p102
        %p213 = pneg %p131
        %p214 = pneg %p128
        %p215 = scmp.lt.s32.totalorder %s16, 1
        %s216 = scalar_select %p215, %s16, 1
        %s217 = smul.addr %s216, 8
        %s218 = scalar_lea.vmem %s4, %s217
        %s219 = smul.u32 8, %s16
        %p220 = scmp.lt.s32.totalorder %s219, 15
        %s221 = scalar_select %p220, %s219, 15
        %s222 = smul.addr %s221, 2
        %s223 = scalar_lea.vmem %s0, %s222
        %s224 = smul.u32 8, %s16
        %s225 = smul.u32 2, %s16
        %p226 = scmp.lt.s32.totalorder %s225, 3
        %s227 = scalar_select %p226, %s225, 3
        %s228 = smul.addr %s227, 8
        %s229 = scalar_lea.vmem %s2, %s228
        %s230 = smul.u32 2, %s16
        %p231 = scmp.lt.s32.totalorder %s16, 1
        %s232 = scalar_select %p231, %s16, 1
        %s233 = smul.addr %s232, 8
        %s234 = scalar_lea.vmem %s4, %s233
        %v236 = vld [vmem:[%s223] sm:$0x3]
        %v237 = vld [vmem:[%s223 + $0x2] sm:$0x3]
        %v238 = vld [vmem:[%s223 + $0x4] sm:$0x3]
        %v239 = vld [vmem:[%s223 + $0x6] sm:$0x3]
        %v240 = vld [vmem:[%s223 + $0x8] sm:$0x3]
        %v241 = vld [vmem:[%s223 + $0xa] sm:$0x3]
        %v242 = vld [vmem:[%s223 + $0xc] sm:$0x3]
        %v243 = vld [vmem:[%s223 + $0xe] sm:$0x3]
        %v244 = vld [vmem:[%s229] sm:$0xff]
        %v245 = vld [vmem:[%s229 + $0x8] sm:$0xff]
        %v246 = vmul.f32 %v236, %v236
        %v247 = vmul.f32 %v237, %v237
        %v248 = vmul.f32 %v238, %v238
        %v249 = vmul.f32 %v239, %v239
        %v250 = vmul.f32 %v240, %v240
        %v251 = vmul.f32 %v241, %v241
        %v252 = vmul.f32 %v242, %v242
        %v253 = vmul.f32 %v243, %v243
        %v262 = vcombine.low %v246, %v247
        %v263 = vcombine.low %v248, %v249
        %v265 = vunpack.c.l.s4 1983009808
        %v266 = vunpack.c.0.s8 %v265
        %v267 = vlaneseq
        %v268 = vshrl.u32 %v267, 7
        %v269 = vsub.s32 %v266, %v268
        %v270 = vrot.slane %v262, %v269
        %v272 = vunpack.c.l.s4 1983009808
        %v273 = vunpack.c.0.s8 %v272
        %v274 = vlaneseq
        %v275 = vshrl.u32 %v274, 7
        %v276 = vsub.s32 %v273, %v275
        %v277 = vrot.slane %v263, %v276
        %v278 = vcombine.low %v270, %v277
        %v279 = vcombine.low %v250, %v251
        %v280 = vcombine.low %v252, %v253
        %v282 = vunpack.c.l.s4 1983009808
        %v283 = vunpack.c.0.s8 %v282
        %v284 = vlaneseq
        %v285 = vshrl.u32 %v284, 7
        %v286 = vsub.s32 %v283, %v285
        %v287 = vrot.slane %v279, %v286
        %v289 = vunpack.c.l.s4 1983009808
        %v290 = vunpack.c.0.s8 %v289
        %v291 = vlaneseq
        %v292 = vshrl.u32 %v291, 7
        %v293 = vsub.s32 %v290, %v292
        %v294 = vrot.slane %v280, %v293
        %v295 = vcombine.low %v287, %v294
        %298 = vadd.xlane.f32.xlu0 %v278
        %v299 = vpop.xlane.xlu0 %298
        %300 = vadd.xlane.f32.xlu0 %v295
        %v301 = vpop.xlane.xlu0 %300
        %v302 = vmax.f32 %v299, 1e-24
        %v303 = vmax.f32 %v301, 1e-24
        %v304 = vrsqrt.pop %v302
        %v305 = vrsqrt.pop %v303
        %v309 = vunpack.c.l.s4 269488144
        %v310 = vunpack.c.0.s8 %v309
        %v311 = vlaneseq
        %v312 = vshrl.u32 %v311, 7
        %v313 = vsub.s32 %v310, %v312
        %v314 = vrot.slane %v304, %v313
        %v316 = vunpack.c.l.s4 842150450
        %v317 = vunpack.c.0.s8 %v316
        %v318 = vlaneseq
        %v319 = vshrl.u32 %v318, 7
        %v320 = vsub.s32 %v317, %v319
        %v321 = vrot.slane %v304, %v320
        %v323 = vunpack.c.l.s4 1414812756
        %v324 = vunpack.c.0.s8 %v323
        %v325 = vlaneseq
        %v326 = vshrl.u32 %v325, 7
        %v327 = vsub.s32 %v324, %v326
        %v328 = vrot.slane %v304, %v327
        %v330 = vunpack.c.l.s4 1987475062
        %v331 = vunpack.c.0.s8 %v330
        %v332 = vlaneseq
        %v333 = vshrl.u32 %v332, 7
        %v334 = vsub.s32 %v331, %v333
        %v335 = vrot.slane %v304, %v334
        %v337 = vunpack.c.l.s4 269488144
        %v338 = vunpack.c.0.s8 %v337
        %v339 = vlaneseq
        %v340 = vshrl.u32 %v339, 7
        %v341 = vsub.s32 %v338, %v340
        %v342 = vrot.slane %v305, %v341
        %v344 = vunpack.c.l.s4 842150450
        %v345 = vunpack.c.0.s8 %v344
        %v346 = vlaneseq
        %v347 = vshrl.u32 %v346, 7
        %v348 = vsub.s32 %v345, %v347
        %v349 = vrot.slane %v305, %v348
        %v351 = vunpack.c.l.s4 1414812756
        %v352 = vunpack.c.0.s8 %v351
        %v353 = vlaneseq
        %v354 = vshrl.u32 %v353, 7
        %v355 = vsub.s32 %v352, %v354
        %v356 = vrot.slane %v305, %v355
        %v358 = vunpack.c.l.s4 1987475062
        %v359 = vunpack.c.0.s8 %v358
        %v360 = vlaneseq
        %v361 = vshrl.u32 %v360, 7
        %v362 = vsub.s32 %v359, %v361
        %v363 = vrot.slane %v305, %v362
        %v372 = vmul.f32 %v236, %v314
        %v373 = vmul.f32 %v237, %v321
        %v374 = vmul.f32 %v238, %v328
        %v375 = vmul.f32 %v239, %v335
        %v376 = vmul.f32 %v240, %v342
        %v377 = vmul.f32 %v241, %v349
        %v378 = vmul.f32 %v242, %v356
        %v379 = vmul.f32 %v243, %v363
        %v388 = vcombine.low %v372, %v373
        %v389 = vcombine.low %v374, %v375
        %v391 = vunpack.c.l.s4 1983009808
        %v392 = vunpack.c.0.s8 %v391
        %v393 = vlaneseq
        %v394 = vshrl.u32 %v393, 7
        %v395 = vsub.s32 %v392, %v394
        %v396 = vrot.slane %v388, %v395
        %v398 = vunpack.c.l.s4 1983009808
        %v399 = vunpack.c.0.s8 %v398
        %v400 = vlaneseq
        %v401 = vshrl.u32 %v400, 7
        %v402 = vsub.s32 %v399, %v401
        %v403 = vrot.slane %v389, %v402
        %v404 = vcombine.low %v396, %v403
        %v405 = vcombine.low %v376, %v377
        %v406 = vcombine.low %v378, %v379
        %v408 = vunpack.c.l.s4 1983009808
        %v409 = vunpack.c.0.s8 %v408
        %v410 = vlaneseq
        %v411 = vshrl.u32 %v410, 7
        %v412 = vsub.s32 %v409, %v411
        %v413 = vrot.slane %v405, %v412
        %v415 = vunpack.c.l.s4 1983009808
        %v416 = vunpack.c.0.s8 %v415
        %v417 = vlaneseq
        %v418 = vshrl.u32 %v417, 7
        %v419 = vsub.s32 %v416, %v418
        %v420 = vrot.slane %v406, %v419
        %v421 = vcombine.low %v413, %v420
        %v424 = vpack.c.bf16 %v421, %v404
        %v425 = vld [vmem:[#allocation2] sm:$0xff]
        %v426 = vld [vmem:[#allocation2 + $0x8] sm:$0xff]
        %v427 = vld [vmem:[#allocation2 + $0x10] sm:$0xff]
        %v428 = vld [vmem:[#allocation2 + $0x18] sm:$0xff]
        %v429 = vld [vmem:[#allocation2 + $0x20] sm:$0xff]
        %v430 = vld [vmem:[#allocation2 + $0x28] sm:$0xff]
        %v431 = vld [vmem:[#allocation2 + $0x30] sm:$0xff]
        %v432 = vld [vmem:[#allocation2 + $0x38] sm:$0xff]
        %v433 = vld [vmem:[#allocation2 + $0x40] sm:$0xff]
        %v434 = vld [vmem:[#allocation2 + $0x48] sm:$0xff]
        %v435 = vld [vmem:[#allocation2 + $0x50] sm:$0xff]
        %v436 = vld [vmem:[#allocation2 + $0x58] sm:$0xff]
        %v437 = vld [vmem:[#allocation2 + $0x60] sm:$0xff]
        %v438 = vld [vmem:[#allocation2 + $0x68] sm:$0xff]
        %v439 = vld [vmem:[#allocation2 + $0x70] sm:$0xff]
        %v440 = vld [vmem:[#allocation2 + $0x78] sm:$0xff]
        %v441 = vld [vmem:[#allocation2 + $0x80] sm:$0xff]
        %v442 = vld [vmem:[#allocation2 + $0x88] sm:$0xff]
        %v443 = vld [vmem:[#allocation2 + $0x90] sm:$0xff]
        %v444 = vld [vmem:[#allocation2 + $0x98] sm:$0xff]
        %v445 = vld [vmem:[#allocation2 + $0xa0] sm:$0xff]
        %v446 = vld [vmem:[#allocation2 + $0xa8] sm:$0xff]
        %v447 = vld [vmem:[#allocation2 + $0xb0] sm:$0xff]
        %v448 = vld [vmem:[#allocation2 + $0xb8] sm:$0xff]
        %v449 = vld [vmem:[#allocation2 + $0xc0] sm:$0xff]
        %v450 = vld [vmem:[#allocation2 + $0xc8] sm:$0xff]
        %v451 = vld [vmem:[#allocation2 + $0xd0] sm:$0xff]
        %v452 = vld [vmem:[#allocation2 + $0xd8] sm:$0xff]
        %v453 = vld [vmem:[#allocation2 + $0xe0] sm:$0xff]
        %v454 = vld [vmem:[#allocation2 + $0xe8] sm:$0xff]
        %v455 = vld [vmem:[#allocation2 + $0xf0] sm:$0xff]
        %v456 = vld [vmem:[#allocation2 + $0xf8] sm:$0xff]
        %v457 = vmul.f32 %v425, %v425
        %v458 = vmul.f32 %v426, %v426
        %v459 = vmul.f32 %v427, %v427
        %v460 = vmul.f32 %v428, %v428
        %v461 = vmul.f32 %v429, %v429
        %v462 = vmul.f32 %v430, %v430
        %v463 = vmul.f32 %v431, %v431
        %v464 = vmul.f32 %v432, %v432
        %v465 = vmul.f32 %v433, %v433
        %v466 = vmul.f32 %v434, %v434
        %v467 = vmul.f32 %v435, %v435
        %v468 = vmul.f32 %v436, %v436
        %v469 = vmul.f32 %v437, %v437
        %v470 = vmul.f32 %v438, %v438
        %v471 = vmul.f32 %v439, %v439
        %v472 = vmul.f32 %v440, %v440
        %v473 = vmul.f32 %v441, %v441
        %v474 = vmul.f32 %v442, %v442
        %v475 = vmul.f32 %v443, %v443
        %v476 = vmul.f32 %v444, %v444
        %v477 = vmul.f32 %v445, %v445
        %v478 = vmul.f32 %v446, %v446
        %v479 = vmul.f32 %v447, %v447
        %v480 = vmul.f32 %v448, %v448
        %v481 = vmul.f32 %v449, %v449
        %v482 = vmul.f32 %v450, %v450
        %v483 = vmul.f32 %v451, %v451
        %v484 = vmul.f32 %v452, %v452
        %v485 = vmul.f32 %v453, %v453
        %v486 = vmul.f32 %v454, %v454
        %v487 = vmul.f32 %v455, %v455
        %v488 = vmul.f32 %v456, %v456
        %v489 = vadd.f32 %v457, %v459
        %v490 = vadd.f32 %v489, %v461
        %v491 = vadd.f32 %v490, %v463
        %v492 = vadd.f32 %v491, %v465
        %v493 = vadd.f32 %v492, %v467
        %v494 = vadd.f32 %v493, %v469
        %v495 = vadd.f32 %v494, %v471
        %v496 = vadd.f32 %v495, %v473
        %v497 = vadd.f32 %v496, %v475
        %v498 = vadd.f32 %v497, %v477
        %v499 = vadd.f32 %v498, %v479
        %v500 = vadd.f32 %v499, %v481
        %v501 = vadd.f32 %v500, %v483
        %v502 = vadd.f32 %v501, %v485
        %v503 = vadd.f32 %v502, %v487
        %v504 = vrot.slane %v503, 4
        %v505 = vadd.f32 %v503, %v504
        %v506 = vrot.slane %v505, 2
        %v507 = vadd.f32 %v505, %v506
        %v508 = vrot.slane %v507, 1
        %v509 = vadd.f32 %v507, %v508
        %v510 = vadd.f32 %v458, %v460
        %v511 = vadd.f32 %v510, %v462
        %v512 = vadd.f32 %v511, %v464
        %v513 = vadd.f32 %v512, %v466
        %v514 = vadd.f32 %v513, %v468
        %v515 = vadd.f32 %v514, %v470
        %v516 = vadd.f32 %v515, %v472
        %v517 = vadd.f32 %v516, %v474
        %v518 = vadd.f32 %v517, %v476
        %v519 = vadd.f32 %v518, %v478
        %v520 = vadd.f32 %v519, %v480
        %v521 = vadd.f32 %v520, %v482
        %v522 = vadd.f32 %v521, %v484
        %v523 = vadd.f32 %v522, %v486
        %v524 = vadd.f32 %v523, %v488
        %v525 = vrot.slane %v524, 4
        %v526 = vadd.f32 %v524, %v525
        %v527 = vrot.slane %v526, 2
        %v528 = vadd.f32 %v526, %v527
        %v529 = vrot.slane %v528, 1
        %v530 = vadd.f32 %v528, %v529
        %v531 = vmax.f32 %v509, 1e-24
        %v532 = vmax.f32 %v530, 1e-24
        %v533 = vrsqrt.pop %v531
        %v534 = vrsqrt.pop %v532
        %v535 = vmul.f32 %v425, %v533
        %v536 = vmul.f32 %v426, %v534
        %v537 = vmul.f32 %v427, %v533
        %v538 = vmul.f32 %v428, %v534
        %v539 = vmul.f32 %v429, %v533
        %v540 = vmul.f32 %v430, %v534
        %v541 = vmul.f32 %v431, %v533
        %v542 = vmul.f32 %v432, %v534
        %v543 = vmul.f32 %v433, %v533
        %v544 = vmul.f32 %v434, %v534
        %v545 = vmul.f32 %v435, %v533
        %v546 = vmul.f32 %v436, %v534
        %v547 = vmul.f32 %v437, %v533
        %v548 = vmul.f32 %v438, %v534
        %v549 = vmul.f32 %v439, %v533
        %v550 = vmul.f32 %v440, %v534
        %v551 = vmul.f32 %v441, %v533
        %v552 = vmul.f32 %v442, %v534
        %v553 = vmul.f32 %v443, %v533
        %v554 = vmul.f32 %v444, %v534
        %v555 = vmul.f32 %v445, %v533
        %v556 = vmul.f32 %v446, %v534
        %v557 = vmul.f32 %v447, %v533
        %v558 = vmul.f32 %v448, %v534
        %v559 = vmul.f32 %v449, %v533
        %v560 = vmul.f32 %v450, %v534
        %v561 = vmul.f32 %v451, %v533
        %v562 = vmul.f32 %v452, %v534
        %v563 = vmul.f32 %v453, %v533
        %v564 = vmul.f32 %v454, %v534
        %v565 = vmul.f32 %v455, %v533
        %v566 = vmul.f32 %v456, %v534
        %v567 = vpack.c.bf16 %v537, %v535
        %v568 = vpack.c.bf16 %v538, %v536
        %v569 = vpack.c.bf16 %v541, %v539
        %v570 = vpack.c.bf16 %v542, %v540
        %v571 = vpack.c.bf16 %v545, %v543
        %v572 = vpack.c.bf16 %v546, %v544
        %v573 = vpack.c.bf16 %v549, %v547
        %v574 = vpack.c.bf16 %v550, %v548
        %v575 = vpack.c.bf16 %v553, %v551
        %v576 = vpack.c.bf16 %v554, %v552
        %v577 = vpack.c.bf16 %v557, %v555
        %v578 = vpack.c.bf16 %v558, %v556
        %v579 = vpack.c.bf16 %v561, %v559
        %v580 = vpack.c.bf16 %v562, %v560
        %v581 = vpack.c.bf16 %v565, %v563
        %v582 = vpack.c.bf16 %v566, %v564
        %583 = vmatprep.subr.bf16.mxu0 %v568
        %584 = vmatpush1.bf16.msra.mxu0 %v567
        %585 = vmatprep.subr.bf16.mxu0 %v570
        %586 = vmatpush1.bf16.msra.mxu0 %v569
        %587 = vmatprep.subr.bf16.mxu0 %v572
        %588 = vmatpush1.bf16.msra.mxu0 %v571
        %589 = vmatprep.subr.bf16.mxu0 %v574
        %590 = vmatpush1.bf16.msra.mxu0 %v573
        %591 = vmatprep.subr.bf16.mxu0 %v576
        %592 = vmatpush1.bf16.msra.mxu0 %v575
        %593 = vmatprep.subr.bf16.mxu0 %v578
        %594 = vmatpush1.bf16.msra.mxu0 %v577
        %595 = vmatprep.subr.bf16.mxu0 %v580
        %596 = vmatpush1.bf16.msra.mxu0 %v579
        %597 = vmatprep.subr.bf16.mxu0 %v582
        %598 = vmatpush1.bf16.msra.mxu0 %v581
        %599 = vmatprep.subr.bf16.mxu0 0
        %600 = vmatpush1.bf16.msra.mxu0 0
        %601 = vmatprep.subr.bf16.mxu0 0
        %602 = vmatpush1.bf16.msra.mxu0 0
        %603 = vmatprep.subr.bf16.mxu0 0
        %604 = vmatpush1.bf16.msra.mxu0 0
        %605 = vmatprep.subr.bf16.mxu0 0
        %606 = vmatpush1.bf16.msra.mxu0 0
        %607 = vmatprep.subr.bf16.mxu0 0
        %608 = vmatpush1.bf16.msra.mxu0 0
        %609 = vmatprep.subr.bf16.mxu0 0
        %610 = vmatpush1.bf16.msra.mxu0 0
        %611 = vmatprep.subr.bf16.mxu0 0
        %612 = vmatpush1.bf16.msra.mxu0 0
        %613 = vmatprep.subr.bf16.mxu0 0
        %614 = vmatpush1.bf16.msra.mxu0 0
        %615 = vmatprep.mubr.bf16.mxu0 0
        %616 = vmatmul.mubr.bf16.gmra.mrb[0].mxu0 %v424
        %v617 = vpop.f32.mrb[0].mxu0
        %v618 = vadd.f32 0.0, %v617
        %v619 = vpop.f32.mrb[0].mxu0
        %v620 = vadd.f32 0.0, %v619
        %v621 = vpop.f32.mrb[0].mxu0
        %v622 = vadd.f32 0.0, %v621
        %v623 = vpop.f32.mrb[0].mxu0
        %v624 = vadd.f32 0.0, %v623
        %625 = vdwg.mxu0
        %v626 = vlaneseq
        %v627 = vand.u32 %v626, 127
        %v628 = vadd.s32 %v627, 128
        %629 = vset.pattern.permute.xlu0 0
        %630 = vperm.xlu0 %629, %v244
        %v631 = vpop.permute.xlu0 %630
        %632 = vset.pattern.permute.xlu0 0
        %633 = vperm.xlu0 %632, %v245
        %v634 = vpop.permute.xlu0 %633
        %vm635 = vcmp.eq.s32.totalorder %v627, %v631
        %vm636 = vcmp.eq.s32.totalorder %v628, %v631
        %vm637 = vcmp.eq.s32.totalorder %v627, %v634
        %vm638 = vcmp.eq.s32.totalorder %v628, %v634
        %v639 = vmul.f32 %v618, 15.0
        %v640 = vmul.f32 %v620, 15.0
        %v641 = vmul.f32 %v622, 15.0
        %v642 = vmul.f32 %v624, 15.0
        %v643 = vsub.f32 %v639, 4.5
        %v644 = vsub.f32 %v640, 4.5
        %v645 = vsub.f32 %v641, 4.5
        %v646 = vsub.f32 %v642, 4.5
        %v647 = vsel %vm635, %v643, %v639
        %v648 = vsel %vm636, %v644, %v640
        %v649 = vsel %vm637, %v645, %v641
        %v650 = vsel %vm638, %v646, %v642
        %v651 = vmax.f32 %v647, %v648
        %652 = vmax.xlane.f32.xlu0 %v651
        %v653 = vpop.xlane.xlu0 %652
        %v654 = vmax.f32 %v649, %v650
        %655 = vmax.xlane.f32.xlu0 %v654
        %v656 = vpop.xlane.xlu0 %655
        %v657 = vsub.f32 %v647, %v653
        %v658 = vsub.f32 %v648, %v653
        %v659 = vsub.f32 %v649, %v656
        %v660 = vsub.f32 %v650, %v656
        %v661 = vmul.f32 %v657, 1.442695
        %v662 = vpow.pop %v661
        %v663 = vmul.f32 %v658, 1.442695
        %v664 = vpow.pop %v663
        %v665 = vmul.f32 %v659, 1.442695
        %v666 = vpow.pop %v665
        %v667 = vmul.f32 %v660, 1.442695
        %v668 = vpow.pop %v667
        %v669 = vadd.f32 %v662, %v664
        %670 = vadd.xlane.f32.xlu0 %v669
        %v671 = vpop.xlane.xlu0 %670
        %v672 = vadd.f32 %v666, %v668
        %673 = vadd.xlane.f32.xlu0 %v672
        %v674 = vpop.xlane.xlu0 %673
        %v675 = vlog2.pop %v671
        %v676 = vmul.f32 %v675, 0.6931472
        %v677 = vlog2.pop %v674
        %v678 = vmul.f32 %v677, 0.6931472
        %v679 = vadd.f32 %v653, %v676
        %v680 = vadd.f32 %v656, %v678
        %v681 = vsel %vm635, %v643, 0.0
        %v682 = vsel %vm636, %v644, 0.0
        %v683 = vsel %vm637, %v645, 0.0
        %v684 = vsel %vm638, %v646, 0.0
        %v685 = vadd.f32 %v681, %v682
        %686 = vadd.xlane.f32.xlu0 %v685
        %v687 = vpop.xlane.xlu0 %686
        %v688 = vadd.f32 %v683, %v684
        %689 = vadd.xlane.f32.xlu0 %v688
        %v690 = vpop.xlane.xlu0 %689
        %v691 = vsub.f32 %v679, %v687
        %v692 = vsub.f32 %v680, %v690
        %vm693 = vcmask 7168
        %v694 = vsel %vm693, %v691, 0.0
        %v695 = vsel %vm693, %v692, 0.0
        %v696 = vadd.f32 %v694, %v695
        %697 = vadd.xlane.f32.xlu0 %v696
        %v698 = vpop.xlane.xlu0 %697
        %v699 = vrot.slane %v698, 4
        %v700 = vadd.f32 %v698, %v699
        %v701 = vrot.slane %v700, 2
        %v702 = vadd.f32 %v700, %v701
        %v703 = vrot.slane %v702, 1
        %v704 = vadd.f32 %v702, %v703
        %s705 = vtos %v704
        %vm706 = vcmp.eq.f32.partialorder %v647, %v653
        %vm707 = vcmp.eq.f32.partialorder %v648, %v653
        %vm708 = vcmp.eq.f32.partialorder %v649, %v656
        %vm709 = vcmp.eq.f32.partialorder %v650, %v656
        %v710 = vsel %vm706, %v627, 256
        %v711 = vsel %vm707, %v628, 256
        %v712 = vsel %vm708, %v627, 256
        %v713 = vsel %vm709, %v628, 256
        %vm714 = vcmp.lt.s32.totalorder %v710, %v711
        %v715 = vsel %vm714, %v710, %v711
        %v716 = vand.u32 %v715, 65535
        %v717 = vshra.s32 %v715, 16
        %v718 = vcvt.s32.f32 %v716
        %v719 = vcvt.s32.f32 %v717
        %720 = vmin.xlane.f32.xlu0 %v719
        %v721 = vpop.xlane.xlu0 %720
        %vm722 = vcmp.eq.f32.partialorder %v719, %v721
        %v723 = vsel %vm722, %v718, inf
        %724 = vmin.xlane.f32.xlu0 %v723
        %v725 = vpop.xlane.xlu0 %724
        %v726 = vcvt.f32.s32 %v725
        %v727 = vcvt.f32.s32 %v721
        %v728 = vshll.u32 %v727, 16
        %v729 = vadd.s32 %v728, %v726
        %vm730 = vcmp.lt.s32.totalorder %v712, %v713
        %v731 = vsel %vm730, %v712, %v713
        %v732 = vand.u32 %v731, 65535
        %v733 = vshra.s32 %v731, 16
        %v734 = vcvt.s32.f32 %v732
        %v735 = vcvt.s32.f32 %v733
        %736 = vmin.xlane.f32.xlu0 %v735
        %v737 = vpop.xlane.xlu0 %736
        %vm738 = vcmp.eq.f32.partialorder %v735, %v737
        %v739 = vsel %vm738, %v734, inf
        %740 = vmin.xlane.f32.xlu0 %v739
        %v741 = vpop.xlane.xlu0 %740
        %v742 = vcvt.f32.s32 %v741
        %v743 = vcvt.f32.s32 %v737
        %v744 = vshll.u32 %v743, 16
        %v745 = vadd.s32 %v744, %v742
        %vm746 = vcmp.eq.s32.totalorder %v729, %v244
        %vm747 = vcmp.eq.s32.totalorder %v745, %v245
        %v748 = vsel %vm746, 1, 0
        %v749 = vsel %vm747, 1, 0
        %v750 = vcvt.s32.f32 %v748
        %v751 = vcvt.s32.f32 %v749
        %v752 = vsel %vm693, %v750, 0.0
        %v753 = vsel %vm693, %v751, 0.0
        %v754 = vadd.f32 %v752, %v753
        %755 = vadd.xlane.f32.xlu0 %v754
        %v756 = vpop.xlane.xlu0 %755
        %v757 = vrot.slane %v756, 4
        %v758 = vadd.f32 %v756, %v757
        %v759 = vrot.slane %v758, 2
        %v760 = vadd.f32 %v758, %v759
        %v761 = vrot.slane %v760, 1
        %v762 = vadd.f32 %v760, %v761
        %s763 = vtos %v762
        %v764 = vld [vmem:[%s1] sm:$0x3]
        %v765 = vld [vmem:[%s1 + $0x2] sm:$0x3]
        %v766 = vld [vmem:[%s1 + $0x4] sm:$0x3]
        %v767 = vld [vmem:[%s1 + $0x6] sm:$0x3]
        %v768 = vld [vmem:[%s1 + $0x8] sm:$0x3]
        %v769 = vld [vmem:[%s1 + $0xa] sm:$0x3]
        %v770 = vld [vmem:[%s1 + $0xc] sm:$0x3]
        %v771 = vld [vmem:[%s1 + $0xe] sm:$0x3]
        %v772 = vld [vmem:[%s1 + $0x10] sm:$0x3]
        %v773 = vld [vmem:[%s1 + $0x12] sm:$0x3]
        %v774 = vld [vmem:[%s1 + $0x14] sm:$0x3]
        %v775 = vld [vmem:[%s1 + $0x16] sm:$0x3]
        %v776 = vld [vmem:[%s1 + $0x18] sm:$0x3]
        %v777 = vld [vmem:[%s1 + $0x1a] sm:$0x3]
        %v778 = vld [vmem:[%s1 + $0x1c] sm:$0x3]
        %v779 = vld [vmem:[%s1 + $0x1e] sm:$0x3]
        %v780 = vrot.slane %v247, 7
        %vm781 = vcmask 1041409
        %v782 = vsel %vm781, %v780, %v246
        %v783 = vrot.slane %v248, 6
        %vm784 = vcmask 1042434
        %v785 = vsel %vm784, %v783, %v782
        %v786 = vrot.slane %v249, 5
        %vm787 = vcmask 1043459
        %v788 = vsel %vm787, %v786, %v785
        %v789 = vrot.slane %v250, 4
        %vm790 = vcmask 1044484
        %v791 = vsel %vm790, %v789, %v788
        %v792 = vrot.slane %v251, 3
        %vm793 = vcmask 1045509
        %v794 = vsel %vm793, %v792, %v791
        %v795 = vrot.slane %v252, 2
        %vm796 = vcmask 1046534
        %v797 = vsel %vm796, %v795, %v794
        %v798 = vrot.slane %v253, 1
        %vm799 = vcmask 1047559
        %v800 = vsel %vm799, %v798, %v797
        %802 = vadd.xlane.f32.xlu0 %v800
        %v803 = vpop.xlane.xlu0 %802
        %v804 = vmax.f32 %v803, 1e-16
        %v805 = vrsqrt.pop %v804
        %v806 = vmul.f32 %v764, %v764
        %v807 = vmul.f32 %v765, %v765
        %v808 = vmul.f32 %v766, %v766
        %v809 = vmul.f32 %v767, %v767
        %v810 = vmul.f32 %v768, %v768
        %v811 = vmul.f32 %v769, %v769
        %v812 = vmul.f32 %v770, %v770
        %v813 = vmul.f32 %v771, %v771
        %v814 = vmul.f32 %v772, %v772
        %v815 = vmul.f32 %v773, %v773
        %v816 = vmul.f32 %v774, %v774
        %v817 = vmul.f32 %v775, %v775
        %v818 = vmul.f32 %v776, %v776
        %v819 = vmul.f32 %v777, %v777
        %v820 = vmul.f32 %v778, %v778
        %v821 = vmul.f32 %v779, %v779
        %v838 = vrot.slane %v807, 7
        %v839 = vsel %vm784, %v838, %v806
        %v840 = vrot.slane %v808, 6
        %v841 = vsel %vm787, %v840, %v839
        %v842 = vrot.slane %v809, 5
        %v843 = vsel %vm790, %v842, %v841
        %v844 = vrot.slane %v810, 4
        %v845 = vsel %vm793, %v844, %v843
        %v846 = vrot.slane %v811, 3
        %v847 = vsel %vm796, %v846, %v845
        %v848 = vrot.slane %v812, 2
        %v849 = vsel %vm799, %v848, %v847
        %v850 = vrot.slane %v813, 1
        %v851 = vsel %vm781, %v814, %v850
        %v852 = vrot.slane %v815, 7
        %v853 = vsel %vm784, %v852, %v851
        %v854 = vrot.slane %v816, 6
        %v855 = vsel %vm787, %v854, %v853
        %v856 = vrot.slane %v817, 5
        %v857 = vsel %vm790, %v856, %v855
        %v858 = vrot.slane %v818, 4
        %v859 = vsel %vm793, %v858, %v857
        %v860 = vrot.slane %v819, 3
        %v861 = vsel %vm796, %v860, %v859
        %v862 = vrot.slane %v820, 2
        %v863 = vsel %vm799, %v862, %v861
        %v864 = vrot.slane %v821, 1
        %vm868 = vcmask 1047553
        %v869 = vsel %vm868, %v849, 0.0
        %870 = vadd.xlane.f32.xlu0 %v869
        %v871 = vpop.xlane.xlu0 %870
        %872 = vadd.xlane.f32.xlu0 %v863
        %v873 = vpop.xlane.xlu0 %872
        %vm874 = vcmask 1040384
        %v875 = vsel %vm874, %v864, 0.0
        %876 = vadd.xlane.f32.xlu0 %v875
        %v877 = vpop.xlane.xlu0 %876
        %v878 = vmax.f32 %v871, 1e-16
        %v879 = vmax.f32 %v873, 1e-16
        %v880 = vmax.f32 %v877, 1e-16
        %v881 = vrsqrt.pop %v878
        %v882 = vrsqrt.pop %v879
        %v883 = vrsqrt.pop %v880
        %v885 = vrot.slane %v805, 1
        %v886 = vrot.slane %v805, 2
        %v887 = vrot.slane %v805, 3
        %v888 = vrot.slane %v805, 4
        %v889 = vrot.slane %v805, 5
        %v890 = vrot.slane %v805, 6
        %v891 = vrot.slane %v805, 7
        %v900 = vmul.f32 %v236, %v805
        %v901 = vmul.f32 %v237, %v885
        %v902 = vmul.f32 %v238, %v886
        %v903 = vmul.f32 %v239, %v887
        %v904 = vmul.f32 %v240, %v888
        %v905 = vmul.f32 %v241, %v889
        %v906 = vmul.f32 %v242, %v890
        %v907 = vmul.f32 %v243, %v891
        %v908 = vpack.c.bf16 %v900, %v900
        %v909 = vpack.c.bf16 %v901, %v901
        %v910 = vpack.c.bf16 %v902, %v902
        %v911 = vpack.c.bf16 %v903, %v903
        %v912 = vpack.c.bf16 %v904, %v904
        %v913 = vpack.c.bf16 %v905, %v905
        %v914 = vpack.c.bf16 %v906, %v906
        %v915 = vpack.c.bf16 %v907, %v907
        %v919 = vrot.slane %v881, 1
        %v920 = vrot.slane %v881, 2
        %v921 = vrot.slane %v881, 3
        %v922 = vrot.slane %v881, 4
        %v923 = vrot.slane %v881, 5
        %v924 = vrot.slane %v881, 6
        %v925 = vrot.slane %v882, 7
        %v926 = vrot.slane %v882, 1
        %v927 = vrot.slane %v882, 2
        %v928 = vrot.slane %v882, 3
        %v929 = vrot.slane %v882, 4
        %v930 = vrot.slane %v882, 5
        %v931 = vrot.slane %v882, 6
        %v932 = vrot.slane %v883, 7
        %v949 = vmul.f32 %v764, %v881
        %v950 = vmul.f32 %v765, %v919
        %v951 = vmul.f32 %v766, %v920
        %v952 = vmul.f32 %v767, %v921
        %v953 = vmul.f32 %v768, %v922
        %v954 = vmul.f32 %v769, %v923
        %v955 = vmul.f32 %v770, %v924
        %v956 = vmul.f32 %v771, %v925
        %v957 = vmul.f32 %v772, %v882
        %v958 = vmul.f32 %v773, %v926
        %v959 = vmul.f32 %v774, %v927
        %v960 = vmul.f32 %v775, %v928
        %v961 = vmul.f32 %v776, %v929
        %v962 = vmul.f32 %v777, %v930
        %v963 = vmul.f32 %v778, %v931
        %v964 = vmul.f32 %v779, %v932
        %v965 = vpack.c.bf16 %v949, %v949
        %v966 = vpack.c.bf16 %v950, %v950
        %v967 = vpack.c.bf16 %v951, %v951
        %v968 = vpack.c.bf16 %v952, %v952
        %v969 = vpack.c.bf16 %v953, %v953
        %v970 = vpack.c.bf16 %v954, %v954
        %v971 = vpack.c.bf16 %v955, %v955
        %v972 = vpack.c.bf16 %v956, %v956
        %v973 = vpack.c.bf16 %v957, %v957
        %v974 = vpack.c.bf16 %v958, %v958
        %v975 = vpack.c.bf16 %v959, %v959
        %v976 = vpack.c.bf16 %v960, %v960
        %v977 = vpack.c.bf16 %v961, %v961
        %v978 = vpack.c.bf16 %v962, %v962
        %v979 = vpack.c.bf16 %v963, %v963
        %v980 = vpack.c.bf16 %v964, %v964
        %v989 = vunpack.c.l.b16 %v908
        %v990 = vunpack.c.l.b16 %v909
        %v991 = vunpack.c.l.b16 %v910
        %v992 = vunpack.c.l.b16 %v911
        %v993 = vunpack.c.l.b16 %v912
        %v994 = vunpack.c.l.b16 %v913
        %v995 = vunpack.c.l.b16 %v914
        %v996 = vunpack.c.l.b16 %v915
        %v997 = vrot.slane %v990, 7
        %v998 = vsel %vm781, %v997, %v989
        %v999 = vrot.slane %v991, 6
        %v1000 = vsel %vm784, %v999, %v998
        %v1001 = vrot.slane %v992, 5
        %v1002 = vsel %vm787, %v1001, %v1000
        %v1003 = vrot.slane %v993, 4
        %v1004 = vsel %vm790, %v1003, %v1002
        %v1005 = vrot.slane %v994, 3
        %v1006 = vsel %vm793, %v1005, %v1004
        %v1007 = vrot.slane %v995, 2
        %v1008 = vsel %vm796, %v1007, %v1006
        %v1009 = vrot.slane %v996, 1
        %v1010 = vsel %vm799, %v1009, %v1008
        %v1011 = vpack.c.b16 %v1010, %v1010
        %v1029 = vunpack.c.l.b16 %v965
        %v1030 = vunpack.c.l.b16 %v966
        %v1031 = vunpack.c.l.b16 %v967
        %v1032 = vunpack.c.l.b16 %v968
        %v1033 = vunpack.c.l.b16 %v969
        %v1034 = vunpack.c.l.b16 %v970
        %v1035 = vunpack.c.l.b16 %v971
        %v1036 = vunpack.c.l.b16 %v972
        %v1037 = vunpack.c.l.b16 %v973
        %v1038 = vunpack.c.l.b16 %v974
        %v1039 = vunpack.c.l.b16 %v975
        %v1040 = vunpack.c.l.b16 %v976
        %v1041 = vunpack.c.l.b16 %v977
        %v1042 = vunpack.c.l.b16 %v978
        %v1043 = vunpack.c.l.b16 %v979
        %v1044 = vunpack.c.l.b16 %v980
        %v1045 = vrot.slane %v1029, 1
        %v1046 = vsel %vm781, %v1030, %v1045
        %v1047 = vrot.slane %v1031, 7
        %v1048 = vsel %vm784, %v1047, %v1046
        %v1049 = vrot.slane %v1032, 6
        %v1050 = vsel %vm787, %v1049, %v1048
        %v1051 = vrot.slane %v1033, 5
        %v1052 = vsel %vm790, %v1051, %v1050
        %v1053 = vrot.slane %v1034, 4
        %v1054 = vsel %vm793, %v1053, %v1052
        %v1055 = vrot.slane %v1035, 3
        %v1056 = vsel %vm796, %v1055, %v1054
        %v1057 = vrot.slane %v1036, 2
        %v1058 = vsel %vm799, %v1057, %v1056
        %v1059 = vrot.slane %v1037, 1
        %v1060 = vsel %vm781, %v1038, %v1059
        %v1061 = vrot.slane %v1039, 7
        %v1062 = vsel %vm784, %v1061, %v1060
        %v1063 = vrot.slane %v1040, 6
        %v1064 = vsel %vm787, %v1063, %v1062
        %v1065 = vrot.slane %v1041, 5
        %v1066 = vsel %vm790, %v1065, %v1064
        %v1067 = vrot.slane %v1042, 4
        %v1068 = vsel %vm793, %v1067, %v1066
        %v1069 = vrot.slane %v1043, 3
        %v1070 = vsel %vm796, %v1069, %v1068
        %v1071 = vrot.slane %v1044, 2
        %v1072 = vsel %vm799, %v1071, %v1070
        %v1073 = vpack.c.b16 %v1072, %v1058
        %1075 = vmatprep.subr.bf16.mxu0 0
        %1076 = vmatpush1.bf16.xpose.msra.mxu0 %v1073
        %1077 = vmatprep.subr.bf16.mxu0 0
        %1078 = vmatpush1.bf16.xpose.msra.mxu0 0
        %1079 = vmatprep.subr.bf16.mxu0 0
        %1080 = vmatpush1.bf16.xpose.msra.mxu0 0
        %1081 = vmatprep.subr.bf16.mxu0 0
        %1082 = vmatpush1.bf16.xpose.msra.mxu0 0
        %1083 = vmatprep.subr.bf16.mxu0 0
        %1084 = vmatpush1.bf16.xpose.msra.mxu0 0
        %1085 = vmatprep.subr.bf16.mxu0 0
        %1086 = vmatpush1.bf16.xpose.msra.mxu0 0
        %1087 = vmatprep.subr.bf16.mxu0 0
        %1088 = vmatpush1.bf16.xpose.msra.mxu0 0
        %1089 = vmatprep.subr.bf16.mxu0 0
        %1090 = vmatpush1.bf16.xpose.msra.mxu0 0
        %1091 = vmatprep.subr.bf16.mxu0 0
        %1092 = vmatpush1.bf16.xpose.msra.mxu0 0
        %1093 = vmatprep.subr.bf16.mxu0 0
        %1094 = vmatpush1.bf16.xpose.msra.mxu0 0
        %1095 = vmatprep.subr.bf16.mxu0 0
        %1096 = vmatpush1.bf16.xpose.msra.mxu0 0
        %1097 = vmatprep.subr.bf16.mxu0 0
        %1098 = vmatpush1.bf16.xpose.msra.mxu0 0
        %1099 = vmatprep.subr.bf16.mxu0 0
        %1100 = vmatpush1.bf16.xpose.msra.mxu0 0
        %1101 = vmatprep.subr.bf16.mxu0 0
        %1102 = vmatpush1.bf16.xpose.msra.mxu0 0
        %1103 = vmatprep.subr.bf16.mxu0 0
        %1104 = vmatpush1.bf16.xpose.msra.mxu0 0
        %1105 = vmatprep.subr.bf16.mxu0 0
        %1106 = vmatpush1.bf16.xpose.msra.mxu0 0
        %1107 = vmatprep.mubr.bf16.mxu0 0
        %1108 = vmatmul.mubr.bf16.gmra.mrb[0].mxu0 %v1011
        %v1109 = vpop.f32.mrb[0].mxu0
        %v1110 = vadd.f32 0.0, %v1109
        %v1111 = vpop.f32.mrb[0].mxu0
        %v1112 = vpop.f32.mrb[0].mxu0
        %v1113 = vpop.f32.mrb[0].mxu0
        %1114 = vdwg.mxu0
        %v1115 = vmul.f32 %v1110, 10.0
        %v1116 = vadd.f32 %v1115, -5.0
        %vm1117 = vcmask 130048
        %v1118 = vsel %vm1117, %v1116, -inf
        %1119 = vmax.xlane.f32.xlu0 %v1118
        %v1120 = vpop.xlane.xlu0 %1119
        %v1121 = vsub.f32 %v1116, %v1120
        %v1122 = vmul.f32 %v1121, 1.442695
        %v1123 = vpow.pop %v1122
        %v1124 = vsel %vm1117, %v1123, 0.0
        %1125 = vadd.xlane.f32.xlu0 %v1124
        %v1126 = vpop.xlane.xlu0 %1125
        %v1127 = vlog2.pop %v1126
        %v1128 = vmul.f32 %v1127, 0.6931472
        %v1129 = vadd.f32 %v1120, %v1128
        %v1130 = vlaneseq
        %v1131 = vshrl.u32 %v1130, 7
        %s1132 = smul.u32 %s16, 8
        %v1133 = vstv %s1132
        %v1134 = vadd.s32 %v1131, %v1133
        %vm1135 = vcmp.eq.s32.totalorder %v627, %v1134
        %v1136 = vsel %vm1135, %v1116, 0.0
        %v1137 = vsel %vm1117, %v1136, 0.0
        %1138 = vadd.xlane.f32.xlu0 %v1137
        %v1139 = vpop.xlane.xlu0 %1138
        %v1140 = vsub.f32 %v1129, %v1139
        %v1141 = vsel %vm693, %v1140, 0.0
        %1142 = vadd.xlane.f32.xlu0 %v1141
        %v1143 = vpop.xlane.xlu0 %1142
        %v1144 = vrot.slane %v1143, 4
        %v1145 = vadd.f32 %v1143, %v1144
        %v1146 = vrot.slane %v1145, 2
        %v1147 = vadd.f32 %v1145, %v1146
        %v1148 = vrot.slane %v1147, 1
        %v1149 = vadd.f32 %v1147, %v1148
        %s1150 = vtos %v1149
        %vm1151 = vcmp.eq.s32.totalorder %v1131, 0
        %vm1152 = vcmp.eq.s32.totalorder %v627, 0
        %vm1153 = vmand %vm1151, %vm1152
        %vm1154 = vcmp.eq.s32.totalorder %v627, 1
        %vm1155 = vmand %vm1151, %vm1154
        %vm1156 = vcmp.eq.s32.totalorder %v627, 2
        %vm1157 = vmand %vm1151, %vm1156
        %v1158 = vstv %s1150
        %v1159 = vsel %vm1157, %v1158, 0.0
        %v1160 = vstv %s763
        %v1161 = vsel %vm1155, %v1160, %v1159
        %v1162 = vstv %s705
        %v1163 = vsel %vm1153, %v1162, %v1161
        %1164 = vst [vmem:[%s234] sm:$0xff] %v1163
        %p1165 = scmp.lt.s32.totalorder %s16, 1
        %s1166 = scalar_select %p1165, %s16, 1
        %s1167 = smul.addr %s1166, 8
        %s1168 = scalar_lea.vmem %s4, %s1167
        // Predicated region
        $region41: #{amsoftmax_proto.1} parent=35 // pred_check
          %p1169 = pneg %p128
        $region42: #{amsoftmax_proto.1} parent=35 // pred_check_branch
          %1171 = sbr.rel (%p1169) target = $region44
        $region43: #{amsoftmax_proto.1} parent=35 // pred_region
          _
        $region44: #{amsoftmax_proto.1} parent=35 // pred_fallthru
          _
      $region36: #{amsoftmax_proto.1} parent=5 // pred_fallthru
        _
      %p1172 = scmp.le.s32.totalorder 2, %s11
      // Predicated region
      $region45: #{amsoftmax_proto.1} parent=5 // pred_check
        %p1173 = pneg %p1172
      $region46: #{amsoftmax_proto.1} parent=5 // pred_check_branch
        %1175 = sbr.rel (%p1173) target = $region48
      $region47: #{amsoftmax_proto.1} parent=5 // pred_region
        %s1176 = ssub.s32 %s11, 2
        // Predicated region
        $region49: #{amsoftmax_proto.1} parent=47 // pred_check
          %p1177 = pneg %p134
        $region50: #{amsoftmax_proto.1} parent=47 // pred_check_branch
          %1179 = sbr.rel (%p1177) target = $region52
        $region51: #{amsoftmax_proto.1} parent=47 // pred_region
          %p1180 = scmp.lt.s32.totalorder %s17, 1
          %s1181 = scalar_select %p1180, %s17, 1
          %s1182 = smul.addr %s1181, 8
          %s1183 = scalar_lea.vmem %s4, %s1182
        $region52: #{amsoftmax_proto.1} parent=47 // pred_fallthru
          _
      $region48: #{amsoftmax_proto.1} parent=5 // pred_fallthru
        _
    $region6: #{amsoftmax_proto.1} parent=1 // loop_footer
      %s15 = sadd.s32 1, %s11
    $region7: #{amsoftmax_proto.1} parent=1 // loop_footer_branch
      %10 = sbr.rel target = $region3
    $region8: #{amsoftmax_proto.1} parent=1 // loop_exit
      _
    %1184 = vsyncpa [#allocation3], 1
    %s1185 = scalar_lea.sflag [#allocation3], 1
    %1186 = vsyncpa %s1185, 1

</llo_original>
